<compile_context>
chip_gen: v6e
topology: v6e:2x2x1
jax: 0.10.0
libtpu: 0.0.40
codegen_flags: <defaults>
</compile_context>

<pallas_src>
import jax
import jax.numpy as jnp
from jax.experimental import pallas as pl
from jax.experimental.pallas import tpu as pltpu

OUTPUT_DIM = 6
SLAB_WIDTH = 128            # lane-dense output width (one full vreg of lanes)
HEAD_WIDTH = 2 * SLAB_WIDTH  # packed head-layer width (alpha|mu slab, log_var slab)


def localization_kernel(x_ref, w1_ref, b1_ref, w2_ref, b2_ref, w3_ref, b3_ref,
                        eps_ref, out_ref):
    """FC stack (Linear -> ReLU -> Linear -> ReLU -> Linear) + reparameterization.

    x_ref   : (B, input_dim) f32 (cast to bf16 in-kernel for the MXU)
    w*_ref  : bf16 weights, b*_ref: f32 biases (pre-prepared, no per-call casts)
    w3/b3   : packed to width 256:
                cols [0:12]          = head weight (alpha)
                cols [12:18]         = head weight cols 0:6   (mu copy)
                cols [128+12:128+18] = head weight cols 6:12  (log_var copy)
                everything else 0
    eps_ref : (B, 128) f32, eps pre-placed at lanes 12:18, zeros elsewhere
    out_ref : (B, 128) f32 slab:
                lanes [0:12]  = alpha = [mu | log_var]
                lanes [12:18] = t = mu + exp(0.5 * log_var) * eps
                lanes [18:128]= zeros (never consumed by the wrapper)
    """
    x = x_ref[...].astype(jnp.bfloat16)                                   # [B, D]

    h1 = jnp.dot(x, w1_ref[...], preferred_element_type=jnp.float32) + b1_ref[...]
    h1 = jnp.maximum(h1, 0.0).astype(jnp.bfloat16)

    h2 = jnp.dot(h1, w2_ref[...], preferred_element_type=jnp.float32) + b2_ref[...]
    h2 = jnp.maximum(h2, 0.0).astype(jnp.bfloat16)

    big = jnp.dot(h2, w3_ref[...], preferred_element_type=jnp.float32) + b3_ref[...]

    # vreg-aligned splits (lane offsets 0 and 128 -> no cross-lane movement).
    alpha_mu = big[:, :SLAB_WIDTH]   # lanes 0:12 alpha, 12:18 mu, rest 0
    log_var = big[:, SLAB_WIDTH:]    # lanes 12:18 log_var, rest 0 (exp(0)=1 * eps 0 = 0)

    # Single fused, unmasked full-width store.
    out_ref[...] = alpha_mu + jnp.exp(0.5 * log_var) * eps_ref[...]


def prepare_params(raw_params):
    """One-time parameter prep: bf16 weights, f32 biases, slab-packed head.

    Do this at init / param-load time, NOT per call (avoids per-call f32->bf16
    convert ops and their extra HBM traffic).
    """
    w1, b1, w2, b2, w3, b3 = raw_params
    hidden = w3.shape[0]

    w3_big = jnp.zeros((hidden, HEAD_WIDTH), jnp.float32)
    w3_big = w3_big.at[:, 0:2 * OUTPUT_DIM].set(w3)                              # alpha
    w3_big = w3_big.at[:, 2 * OUTPUT_DIM:3 * OUTPUT_DIM].set(w3[:, :OUTPUT_DIM])  # mu copy
    w3_big = w3_big.at[:, SLAB_WIDTH + 2 * OUTPUT_DIM:
                       SLAB_WIDTH + 3 * OUTPUT_DIM].set(w3[:, OUTPUT_DIM:])       # log_var copy

    b3_big = jnp.zeros((1, HEAD_WIDTH), jnp.float32)
    b3_big = b3_big.at[:, 0:2 * OUTPUT_DIM].set(b3)
    b3_big = b3_big.at[:, 2 * OUTPUT_DIM:3 * OUTPUT_DIM].set(b3[:, :OUTPUT_DIM])
    b3_big = b3_big.at[:, SLAB_WIDTH + 2 * OUTPUT_DIM:
                       SLAB_WIDTH + 3 * OUTPUT_DIM].set(b3[:, OUTPUT_DIM:])

    return (w1.astype(jnp.bfloat16), b1.astype(jnp.float32),
            w2.astype(jnp.bfloat16), b2.astype(jnp.float32),
            w3_big.astype(jnp.bfloat16), b3_big.astype(jnp.float32))


@jax.jit
def localization_forward(x, prepared_params, eps):
    """LocalizationNet forward. Returns dict with mu_t, log_var_t, t."""
    B = x.shape[0]
    x_flat = x.reshape(B, -1)  # nn.Flatten (row-major); stays f32, cast in-kernel.
    # Pre-place eps at lanes 12:18 of a lane-dense (B, 128) slab (free XLA pad).
    eps_slab = jnp.pad(eps.astype(jnp.float32),
                       ((0, 0), (2 * OUTPUT_DIM, SLAB_WIDTH - 3 * OUTPUT_DIM)))
    w1, b1, w2, b2, w3_big, b3_big = prepared_params

    args = (x_flat, w1, b1, w2, b2, w3_big, b3_big, eps_slab)
    slab = pl.pallas_call(
        localization_kernel,
        out_shape=jax.ShapeDtypeStruct((B, SLAB_WIDTH), jnp.float32),
        in_specs=[pl.BlockSpec(memory_space=pltpu.MemorySpace.VMEM)
                  for _ in args],
        out_specs=pl.BlockSpec(memory_space=pltpu.MemorySpace.VMEM),
    )(*args)

    mu_t = slab[:, :OUTPUT_DIM]
    log_var_t = slab[:, OUTPUT_DIM:2 * OUTPUT_DIM]
    t = slab[:, 2 * OUTPUT_DIM:3 * OUTPUT_DIM]
    return {"mu_t": mu_t, "log_var_t": log_var_t, "t": t}


def init_params(key, input_dim, fc_hidden_dims, prior_mu, prior_var):
    """Deterministic f32 parameters matching the torch module's __init__."""
    dims = [input_dim] + list(fc_hidden_dims)
    keys = jax.random.split(key, len(dims) - 1)
    params = []
    for i in range(len(dims) - 1):
        w = 0.05 * jax.random.normal(keys[i], (dims[i], dims[i + 1]), jnp.float32)
        b = jnp.zeros((1, dims[i + 1]), jnp.float32)
        params.extend([w, b])
    # regression head: weight filled with 0, bias = [prior_mu, log(prior_var)]
    w_last = jnp.zeros((fc_hidden_dims[-1], 2 * OUTPUT_DIM), jnp.float32)
    b_last = jnp.concatenate(
        [prior_mu, jnp.log(prior_var)], axis=0).reshape(1, 2 * OUTPUT_DIM)
    params.extend([w_last, b_last])
    return tuple(params)


def reference_forward(x, raw_params, eps):
    """Pure-JAX f32 reference of the same forward pass (correctness check)."""
    B = x.shape[0]
    h = x.reshape(B, -1).astype(jnp.float32)
    w1, b1, w2, b2, w3, b3 = raw_params
    h = jnp.maximum(h @ w1 + b1, 0.0)
    h = jnp.maximum(h @ w2 + b2, 0.0)
    alpha = h @ w3 + b3
    mu, lv = alpha[:, :OUTPUT_DIM], alpha[:, OUTPUT_DIM:]
    return mu, lv, mu + jnp.exp(0.5 * lv) * eps


if __name__ == "__main__":
    # Config: small image [2, 4, 16, 16] -> input_dim = 4*16*16 = 1024
    B, C, H, W = 2, 4, 16, 16
    input_dim = C * H * W
    fc_hidden_dims = [64, 32]
    prior_mu_transform = jnp.array([1.0, 0.0, 0.0, 0.0, 1.0, 0.0], jnp.float32)
    prior_var_transform = jnp.array([0.05] * OUTPUT_DIM, jnp.float32)

    key = jax.random.PRNGKey(0)
    k_x, k_p, k_eps, k_head = jax.random.split(key, 4)

    x = jax.random.normal(k_x, (B, C, H, W), jnp.float32)
    raw_params = init_params(k_p, input_dim, fc_hidden_dims,
                             prior_mu_transform, prior_var_transform)
    # TODO(synk): torch.randn_like draws eps inside forward(); here eps is an
    # explicit deterministic input (could use pltpu.prng_* in-kernel instead).
    eps = jax.random.normal(k_eps, (B, OUTPUT_DIM), jnp.float32)

    # --- module-faithful init (head weight = 0) ---
    prepared = prepare_params(raw_params)          # one-time param prep
    results = localization_forward(x, prepared, eps)
    jax.block_until_ready(results)

    mu_ref, lv_ref, t_ref = reference_forward(x, raw_params, eps)
    # bf16 matmul inputs -> compare to the f32 reference with loosened tolerances.
    assert jnp.allclose(results["mu_t"], mu_ref, rtol=2e-2, atol=2e-2)
    assert jnp.allclose(results["log_var_t"], lv_ref, rtol=2e-2, atol=2e-2)
    assert jnp.allclose(results["t"], t_ref, rtol=2e-2, atol=2e-2)
    assert results["t"].shape == (B, OUTPUT_DIM)

    # --- extra check with a non-zero regression head so the full matmul path
    #     (including the slab-packed head weight) is actually exercised ---
    w3_rand = 0.05 * jax.random.normal(k_head, raw_params[4].shape, jnp.float32)
    raw_params_chk = raw_params[:4] + (w3_rand,) + raw_params[5:]
    prepared_chk = prepare_params(raw_params_chk)
    res_chk = localization_forward(x, prepared_chk, eps)
    jax.block_until_ready(res_chk)
    mu_r, lv_r, t_r = reference_forward(x, raw_params_chk, eps)
    assert jnp.allclose(res_chk["mu_t"], mu_r, rtol=2e-2, atol=2e-2)
    assert jnp.allclose(res_chk["log_var_t"], lv_r, rtol=2e-2, atol=2e-2)
    assert jnp.allclose(res_chk["t"], t_r, rtol=2e-2, atol=2e-2)

    print("KERNEL_OK")
</pallas_src>

<mosaic_0001>
module attributes {stable_mosaic.version = 11 : i64} {
  func.func @localization_kernel(%arg0: memref<2x1024xf32, #tpu.memory_space<vmem>>, %arg1: memref<1024x64xbf16, #tpu.memory_space<vmem>>, %arg2: memref<1x64xf32, #tpu.memory_space<vmem>>, %arg3: memref<64x32xbf16, #tpu.memory_space<vmem>>, %arg4: memref<1x32xf32, #tpu.memory_space<vmem>>, %arg5: memref<32x256xbf16, #tpu.memory_space<vmem>>, %arg6: memref<1x256xf32, #tpu.memory_space<vmem>>, %arg7: memref<2x128xf32, #tpu.memory_space<vmem>>, %arg8: memref<2x128xf32, #tpu.memory_space<vmem>>) attributes {dimension_semantics = [], scalar_prefetch = 0 : i64, scratch_operands = 0 : i64, tpu.core_type = #tpu.core_type<tc>} {
    %c0 = arith.constant 0 : index
    %c0_0 = arith.constant 0 : index
    %0 = vector.load %arg0[%c0, %c0_0] : memref<2x1024xf32, #tpu.memory_space<vmem>>, vector<2x1024xf32>
    %1 = arith.truncf %0 : vector<2x1024xf32> to vector<2x1024xbf16>
    %c0_1 = arith.constant 0 : index
    %c0_2 = arith.constant 0 : index
    %2 = vector.load %arg1[%c0_1, %c0_2] : memref<1024x64xbf16, #tpu.memory_space<vmem>>, vector<1024x64xbf16>
    %cst = arith.constant dense<0.000000e+00> : vector<2x64xf32>
    %3 = tpu.matmul %1, %2, %cst {dimension_numbers = #tpu.dot_dimension_numbers<[1], [0], [0], [1], [0, 0, 1, 1], [], []>} : vector<2x1024xbf16>, vector<1024x64xbf16>, vector<2x64xf32> -> vector<2x64xf32>
    %c0_3 = arith.constant 0 : index
    %c0_4 = arith.constant 0 : index
    %4 = vector.load %arg2[%c0_3, %c0_4] : memref<1x64xf32, #tpu.memory_space<vmem>>, vector<1x64xf32>
    %5 = vector.broadcast %4 : vector<1x64xf32> to vector<2x64xf32>
    %6 = arith.addf %3, %5 : vector<2x64xf32>
    %cst_5 = arith.constant 0.000000e+00 : f32
    %7 = vector.broadcast %cst_5 : f32 to vector<2x64xf32>
    %8 = arith.maximumf %6, %7 : vector<2x64xf32>
    %9 = arith.truncf %8 : vector<2x64xf32> to vector<2x64xbf16>
    %c0_6 = arith.constant 0 : index
    %c0_7 = arith.constant 0 : index
    %10 = vector.load %arg3[%c0_6, %c0_7] : memref<64x32xbf16, #tpu.memory_space<vmem>>, vector<64x32xbf16>
    %cst_8 = arith.constant dense<0.000000e+00> : vector<2x32xf32>
    %11 = tpu.matmul %9, %10, %cst_8 {dimension_numbers = #tpu.dot_dimension_numbers<[1], [0], [0], [1], [0, 0, 1, 1], [], []>} : vector<2x64xbf16>, vector<64x32xbf16>, vector<2x32xf32> -> vector<2x32xf32>
    %c0_9 = arith.constant 0 : index
    %c0_10 = arith.constant 0 : index
    %12 = vector.load %arg4[%c0_9, %c0_10] : memref<1x32xf32, #tpu.memory_space<vmem>>, vector<1x32xf32>
    %13 = vector.broadcast %12 : vector<1x32xf32> to vector<2x32xf32>
    %14 = arith.addf %11, %13 : vector<2x32xf32>
    %cst_11 = arith.constant 0.000000e+00 : f32
    %15 = vector.broadcast %cst_11 : f32 to vector<2x32xf32>
    %16 = arith.maximumf %14, %15 : vector<2x32xf32>
    %17 = arith.truncf %16 : vector<2x32xf32> to vector<2x32xbf16>
    %c0_12 = arith.constant 0 : index
    %c0_13 = arith.constant 0 : index
    %18 = vector.load %arg5[%c0_12, %c0_13] : memref<32x256xbf16, #tpu.memory_space<vmem>>, vector<32x256xbf16>
    %cst_14 = arith.constant dense<0.000000e+00> : vector<2x256xf32>
    %19 = tpu.matmul %17, %18, %cst_14 {dimension_numbers = #tpu.dot_dimension_numbers<[1], [0], [0], [1], [0, 0, 1, 1], [], []>} : vector<2x32xbf16>, vector<32x256xbf16>, vector<2x256xf32> -> vector<2x256xf32>
    %c0_15 = arith.constant 0 : index
    %c0_16 = arith.constant 0 : index
    %20 = vector.load %arg6[%c0_15, %c0_16] : memref<1x256xf32, #tpu.memory_space<vmem>>, vector<1x256xf32>
    %21 = vector.broadcast %20 : vector<1x256xf32> to vector<2x256xf32>
    %22 = arith.addf %19, %21 : vector<2x256xf32>
    %23 = vector.extract_strided_slice %22 {offsets = [0, 0], sizes = [2, 128], strides = [1, 1]} : vector<2x256xf32> to vector<2x128xf32>
    %24 = vector.extract_strided_slice %22 {offsets = [0, 128], sizes = [2, 128], strides = [1, 1]} : vector<2x256xf32> to vector<2x128xf32>
    %cst_17 = arith.constant 5.000000e-01 : f32
    %25 = vector.broadcast %cst_17 : f32 to vector<2x128xf32>
    %26 = arith.mulf %25, %24 : vector<2x128xf32>
    %27 = math.exp %26 : vector<2x128xf32>
    %c0_18 = arith.constant 0 : index
    %c0_19 = arith.constant 0 : index
    %28 = vector.load %arg7[%c0_18, %c0_19] : memref<2x128xf32, #tpu.memory_space<vmem>>, vector<2x128xf32>
    %29 = arith.mulf %27, %28 : vector<2x128xf32>
    %30 = arith.addf %23, %29 : vector<2x128xf32>
    %c0_20 = arith.constant 0 : index
    %c0_21 = arith.constant 0 : index
    %31 = vector.load %arg8[%c0_20, %c0_21] : memref<2x128xf32, #tpu.memory_space<vmem>>, vector<2x128xf32>
    tpu.vector_store %arg8[%c0_20, %c0_21], %30 {strides = array<i32>} : memref<2x128xf32, #tpu.memory_space<vmem>>, vector<2x128xf32>,
    return
  }
}

</mosaic_0001>

<llo_original>
// kernel: localization_forward.1
$region0: #{localization_forward.1}
  #allocation0 [shape = 'u32[]', space=smem, size = 0x4, offset = 0x4, fixed_abs, tag = 'smem constant byte address 0x4 - core index']
  #allocation1 [shape = 'u32[144,128]{1,0:T(1,128)}', space=vmem, size = 0x12000, scoped, tag = 'internal scratch']
  %s0 = inlined_call_operand.vmem [shape: f32[2,1024], index: 0, kind: input, shape index: {}]
  %s1 = inlined_call_operand.vmem [shape: bf16[1024,64], index: 1, kind: input, shape index: {}]
  %s2 = inlined_call_operand.vmem [shape: f32[1,64], index: 2, kind: input, shape index: {}]
  %s3 = inlined_call_operand.vmem [shape: bf16[64,32], index: 3, kind: input, shape index: {}]
  %s4 = inlined_call_operand.vmem [shape: f32[1,32], index: 4, kind: input, shape index: {}]
  %s5 = inlined_call_operand.vmem [shape: bf16[32,256], index: 5, kind: input, shape index: {}]
  %s6 = inlined_call_operand.vmem [shape: f32[1,256], index: 6, kind: input, shape index: {}]
  %s7 = inlined_call_operand.vmem [shape: f32[2,128], index: 7, kind: input, shape index: {}]
  %s8 = inlined_call_operand.vmem [shape: f32[2,128], index: 8, kind: output, shape index: {}]
  %s9 = sld [smem:[#allocation0]]
  $region42: #{localization_forward.1} parent=0
    _
  %s11 = ssub.s32 1, %s9
  %s12 = scalar_select 0, %s11, %s9
  // Predicated region
  $region2: #{localization_forward.1} parent=0 // pred_check
    _
  $region3: #{localization_forward.1} parent=0 // pred_check_branch
    %14 = sbr.rel (0) target = $region5
  $region4: #{localization_forward.1} parent=0 // pred_region
    _
  $region5: #{localization_forward.1} parent=0 // pred_fallthru
    _
  // Predicated region
  $region6: #{localization_forward.1} parent=0 // pred_check
    _
  $region7: #{localization_forward.1} parent=0 // pred_check_branch
    %16 = sbr.rel (0) target = $region9
  $region8: #{localization_forward.1} parent=0 // pred_region
    _
  $region9: #{localization_forward.1} parent=0 // pred_fallthru
    _
  // Predicated region
  $region10: #{localization_forward.1} parent=0 // pred_check
    _
  $region11: #{localization_forward.1} parent=0 // pred_check_branch
    %18 = sbr.rel (0) target = $region13
  $region12: #{localization_forward.1} parent=0 // pred_region
    _
  $region13: #{localization_forward.1} parent=0 // pred_fallthru
    _
  // Predicated region
  $region14: #{localization_forward.1} parent=0 // pred_check
    _
  $region15: #{localization_forward.1} parent=0 // pred_check_branch
    %20 = sbr.rel (0) target = $region17
  $region16: #{localization_forward.1} parent=0 // pred_region
    _
  $region17: #{localization_forward.1} parent=0 // pred_fallthru
    _
  // Predicated region
  $region18: #{localization_forward.1} parent=0 // pred_check
    _
  $region19: #{localization_forward.1} parent=0 // pred_check_branch
    %22 = sbr.rel (0) target = $region21
  $region20: #{localization_forward.1} parent=0 // pred_region
    _
  $region21: #{localization_forward.1} parent=0 // pred_fallthru
    _
  // Predicated region
  $region22: #{localization_forward.1} parent=0 // pred_check
    _
  $region23: #{localization_forward.1} parent=0 // pred_check_branch
    %24 = sbr.rel (0) target = $region25
  $region24: #{localization_forward.1} parent=0 // pred_region
    _
  $region25: #{localization_forward.1} parent=0 // pred_fallthru
    _
  // Predicated region
  $region26: #{localization_forward.1} parent=0 // pred_check
    _
  $region27: #{localization_forward.1} parent=0 // pred_check_branch
    %26 = sbr.rel (0) target = $region29
  $region28: #{localization_forward.1} parent=0 // pred_region
    _
  $region29: #{localization_forward.1} parent=0 // pred_fallthru
    _
  // Predicated region
  $region30: #{localization_forward.1} parent=0 // pred_check
    _
  $region31: #{localization_forward.1} parent=0 // pred_check_branch
    %28 = sbr.rel (0) target = $region33
  $region32: #{localization_forward.1} parent=0 // pred_region
    _
  $region33: #{localization_forward.1} parent=0 // pred_fallthru
    _
  %v30 = vld [vmem:[%s0] sm:$0xff]
  %v31 = vld [vmem:[%s0 + $0x8] sm:$0xff]
  %v34 = vcombine.high %v30, %v30
  %v36 = vunpack.c.l.s4 1983009808
  %v37 = vunpack.c.0.s8 %v36
  %v38 = vlaneseq
  %v39 = vshrl.u32 %v38, 7
  %v40 = vsub.s32 %v37, %v39
  %v41 = vrot.slane %v30, %v40
  %v43 = vunpack.c.l.s4 1983009808
  %v44 = vunpack.c.0.s8 %v43
  %v45 = vlaneseq
  %v46 = vshrl.u32 %v45, 7
  %v47 = vsub.s32 %v44, %v46
  %v48 = vrot.slane %v34, %v47
  %v49 = vcombine.high %v41, %v41
  %v50 = vcombine.high %v48, %v48
  %v51 = vcombine.high %v31, %v31
  %v53 = vunpack.c.l.s4 1983009808
  %v54 = vunpack.c.0.s8 %v53
  %v55 = vlaneseq
  %v56 = vshrl.u32 %v55, 7
  %v57 = vsub.s32 %v54, %v56
  %v58 = vrot.slane %v31, %v57
  %v60 = vunpack.c.l.s4 1983009808
  %v61 = vunpack.c.0.s8 %v60
  %v62 = vlaneseq
  %v63 = vshrl.u32 %v62, 7
  %v64 = vsub.s32 %v61, %v63
  %v65 = vrot.slane %v51, %v64
  %v66 = vcombine.high %v58, %v58
  %v67 = vcombine.high %v65, %v65
  %v76 = vpack.c.bf16 %v41, %v41
  %v77 = vpack.c.bf16 %v49, %v49
  %v78 = vpack.c.bf16 %v48, %v48
  %v79 = vpack.c.bf16 %v50, %v50
  %v80 = vpack.c.bf16 %v58, %v58
  %v81 = vpack.c.bf16 %v66, %v66
  %v82 = vpack.c.bf16 %v65, %v65
  %v83 = vpack.c.bf16 %v67, %v67
  %v84 = vld [vmem:[%s1] sm:$0xf]
  %v85 = vld [vmem:[%s1 + $0x4] sm:$0xf]
  %v86 = vld [vmem:[%s1 + $0x8] sm:$0xf]
  %v87 = vld [vmem:[%s1 + $0xc] sm:$0xf]
  %v88 = vld [vmem:[%s1 + $0x10] sm:$0xf]
  %v89 = vld [vmem:[%s1 + $0x14] sm:$0xf]
  %v90 = vld [vmem:[%s1 + $0x18] sm:$0xf]
  %v91 = vld [vmem:[%s1 + $0x1c] sm:$0xf]
  %v92 = vld [vmem:[%s1 + $0x20] sm:$0xf]
  %v93 = vld [vmem:[%s1 + $0x24] sm:$0xf]
  %v94 = vld [vmem:[%s1 + $0x28] sm:$0xf]
  %v95 = vld [vmem:[%s1 + $0x2c] sm:$0xf]
  %v96 = vld [vmem:[%s1 + $0x30] sm:$0xf]
  %v97 = vld [vmem:[%s1 + $0x34] sm:$0xf]
  %v98 = vld [vmem:[%s1 + $0x38] sm:$0xf]
  %v99 = vld [vmem:[%s1 + $0x3c] sm:$0xf]
  %v100 = vld [vmem:[%s1 + $0x40] sm:$0xf]
  %v101 = vld [vmem:[%s1 + $0x44] sm:$0xf]
  %v102 = vld [vmem:[%s1 + $0x48] sm:$0xf]
  %v103 = vld [vmem:[%s1 + $0x4c] sm:$0xf]
  %v104 = vld [vmem:[%s1 + $0x50] sm:$0xf]
  %v105 = vld [vmem:[%s1 + $0x54] sm:$0xf]
  %v106 = vld [vmem:[%s1 + $0x58] sm:$0xf]
  %v107 = vld [vmem:[%s1 + $0x5c] sm:$0xf]
  %v108 = vld [vmem:[%s1 + $0x60] sm:$0xf]
  %v109 = vld [vmem:[%s1 + $0x64] sm:$0xf]
  %v110 = vld [vmem:[%s1 + $0x68] sm:$0xf]
  %v111 = vld [vmem:[%s1 + $0x6c] sm:$0xf]
  %v112 = vld [vmem:[%s1 + $0x70] sm:$0xf]
  %v113 = vld [vmem:[%s1 + $0x74] sm:$0xf]
  %v114 = vld [vmem:[%s1 + $0x78] sm:$0xf]
  %v115 = vld [vmem:[%s1 + $0x7c] sm:$0xf]
  %v116 = vld [vmem:[%s1 + $0x80] sm:$0xf]
  %v117 = vld [vmem:[%s1 + $0x84] sm:$0xf]
  %v118 = vld [vmem:[%s1 + $0x88] sm:$0xf]
  %v119 = vld [vmem:[%s1 + $0x8c] sm:$0xf]
  %v120 = vld [vmem:[%s1 + $0x90] sm:$0xf]
  %v121 = vld [vmem:[%s1 + $0x94] sm:$0xf]
  %v122 = vld [vmem:[%s1 + $0x98] sm:$0xf]
  %v123 = vld [vmem:[%s1 + $0x9c] sm:$0xf]
  %v124 = vld [vmem:[%s1 + $0xa0] sm:$0xf]
  %v125 = vld [vmem:[%s1 + $0xa4] sm:$0xf]
  %v126 = vld [vmem:[%s1 + $0xa8] sm:$0xf]
  %v127 = vld [vmem:[%s1 + $0xac] sm:$0xf]
  %v128 = vld [vmem:[%s1 + $0xb0] sm:$0xf]
  %v129 = vld [vmem:[%s1 + $0xb4] sm:$0xf]
  %v130 = vld [vmem:[%s1 + $0xb8] sm:$0xf]
  %v131 = vld [vmem:[%s1 + $0xbc] sm:$0xf]
  %v132 = vld [vmem:[%s1 + $0xc0] sm:$0xf]
  %v133 = vld [vmem:[%s1 + $0xc4] sm:$0xf]
  %v134 = vld [vmem:[%s1 + $0xc8] sm:$0xf]
  %v135 = vld [vmem:[%s1 + $0xcc] sm:$0xf]
  %v136 = vld [vmem:[%s1 + $0xd0] sm:$0xf]
  %v137 = vld [vmem:[%s1 + $0xd4] sm:$0xf]
  %v138 = vld [vmem:[%s1 + $0xd8] sm:$0xf]
  %v139 = vld [vmem:[%s1 + $0xdc] sm:$0xf]
  %v140 = vld [vmem:[%s1 + $0xe0] sm:$0xf]
  %v141 = vld [vmem:[%s1 + $0xe4] sm:$0xf]
  %v142 = vld [vmem:[%s1 + $0xe8] sm:$0xf]
  %v143 = vld [vmem:[%s1 + $0xec] sm:$0xf]
  %v144 = vld [vmem:[%s1 + $0xf0] sm:$0xf]
  %v145 = vld [vmem:[%s1 + $0xf4] sm:$0xf]
  %v146 = vld [vmem:[%s1 + $0xf8] sm:$0xf]
  %v147 = vld [vmem:[%s1 + $0xfc] sm:$0xf]
  %v148 = vld [vmem:[%s1 + $0x100] sm:$0xf]
  %v149 = vld [vmem:[%s1 + $0x104] sm:$0xf]
  %v150 = vld [vmem:[%s1 + $0x108] sm:$0xf]
  %v151 = vld [vmem:[%s1 + $0x10c] sm:$0xf]
  %v152 = vld [vmem:[%s1 + $0x110] sm:$0xf]
  %v153 = vld [vmem:[%s1 + $0x114] sm:$0xf]
  %v154 = vld [vmem:[%s1 + $0x118] sm:$0xf]
  %v155 = vld [vmem:[%s1 + $0x11c] sm:$0xf]
  %v156 = vld [vmem:[%s1 + $0x120] sm:$0xf]
  %v157 = vld [vmem:[%s1 + $0x124] sm:$0xf]
  %v158 = vld [vmem:[%s1 + $0x128] sm:$0xf]
  %v159 = vld [vmem:[%s1 + $0x12c] sm:$0xf]
  %v160 = vld [vmem:[%s1 + $0x130] sm:$0xf]
  %v161 = vld [vmem:[%s1 + $0x134] sm:$0xf]
  %v162 = vld [vmem:[%s1 + $0x138] sm:$0xf]
  %v163 = vld [vmem:[%s1 + $0x13c] sm:$0xf]
  %v164 = vld [vmem:[%s1 + $0x140] sm:$0xf]
  %v165 = vld [vmem:[%s1 + $0x144] sm:$0xf]
  %v166 = vld [vmem:[%s1 + $0x148] sm:$0xf]
  %v167 = vld [vmem:[%s1 + $0x14c] sm:$0xf]
  %v168 = vld [vmem:[%s1 + $0x150] sm:$0xf]
  %v169 = vld [vmem:[%s1 + $0x154] sm:$0xf]
  %v170 = vld [vmem:[%s1 + $0x158] sm:$0xf]
  %v171 = vld [vmem:[%s1 + $0x15c] sm:$0xf]
  %v172 = vld [vmem:[%s1 + $0x160] sm:$0xf]
  %v173 = vld [vmem:[%s1 + $0x164] sm:$0xf]
  %v174 = vld [vmem:[%s1 + $0x168] sm:$0xf]
  %v175 = vld [vmem:[%s1 + $0x16c] sm:$0xf]
  %v176 = vld [vmem:[%s1 + $0x170] sm:$0xf]
  %v177 = vld [vmem:[%s1 + $0x174] sm:$0xf]
  %v178 = vld [vmem:[%s1 + $0x178] sm:$0xf]
  %v179 = vld [vmem:[%s1 + $0x17c] sm:$0xf]
  %v180 = vld [vmem:[%s1 + $0x180] sm:$0xf]
  %v181 = vld [vmem:[%s1 + $0x184] sm:$0xf]
  %v182 = vld [vmem:[%s1 + $0x188] sm:$0xf]
  %v183 = vld [vmem:[%s1 + $0x18c] sm:$0xf]
  %v184 = vld [vmem:[%s1 + $0x190] sm:$0xf]
  %v185 = vld [vmem:[%s1 + $0x194] sm:$0xf]
  %v186 = vld [vmem:[%s1 + $0x198] sm:$0xf]
  %v187 = vld [vmem:[%s1 + $0x19c] sm:$0xf]
  %v188 = vld [vmem:[%s1 + $0x1a0] sm:$0xf]
  %v189 = vld [vmem:[%s1 + $0x1a4] sm:$0xf]
  %v190 = vld [vmem:[%s1 + $0x1a8] sm:$0xf]
  %v191 = vld [vmem:[%s1 + $0x1ac] sm:$0xf]
  %v192 = vld [vmem:[%s1 + $0x1b0] sm:$0xf]
  %v193 = vld [vmem:[%s1 + $0x1b4] sm:$0xf]
  %v194 = vld [vmem:[%s1 + $0x1b8] sm:$0xf]
  %v195 = vld [vmem:[%s1 + $0x1bc] sm:$0xf]
  %v196 = vld [vmem:[%s1 + $0x1c0] sm:$0xf]
  %v197 = vld [vmem:[%s1 + $0x1c4] sm:$0xf]
  %v198 = vld [vmem:[%s1 + $0x1c8] sm:$0xf]
  %v199 = vld [vmem:[%s1 + $0x1cc] sm:$0xf]
  %v200 = vld [vmem:[%s1 + $0x1d0] sm:$0xf]
  %v201 = vld [vmem:[%s1 + $0x1d4] sm:$0xf]
  %v202 = vld [vmem:[%s1 + $0x1d8] sm:$0xf]
  %v203 = vld [vmem:[%s1 + $0x1dc] sm:$0xf]
  %v204 = vld [vmem:[%s1 + $0x1e0] sm:$0xf]
  %v205 = vld [vmem:[%s1 + $0x1e4] sm:$0xf]
  %v206 = vld [vmem:[%s1 + $0x1e8] sm:$0xf]
  %v207 = vld [vmem:[%s1 + $0x1ec] sm:$0xf]
  %v208 = vld [vmem:[%s1 + $0x1f0] sm:$0xf]
  %v209 = vld [vmem:[%s1 + $0x1f4] sm:$0xf]
  %v210 = vld [vmem:[%s1 + $0x1f8] sm:$0xf]
  %v211 = vld [vmem:[%s1 + $0x1fc] sm:$0xf]
  %v212 = vld [vmem:[%s2] sm:$0x1]
  %v214 = vlaneseq
  %v215 = vshrl.u32 %v214, 7
  %v216 = vsub.s32 0, %v215
  %v217 = vrot.slane %v212, %v216
  %v347 = vunpack.c.l.b16 %v84
  %v348 = vunpack.c.l.b16 %v85
  %v349 = vunpack.c.l.b16 %v86
  %v350 = vunpack.c.l.b16 %v87
  %v351 = vunpack.c.l.b16 %v88
  %v352 = vunpack.c.l.b16 %v89
  %v353 = vunpack.c.l.b16 %v90
  %v354 = vunpack.c.l.b16 %v91
  %v355 = vunpack.c.l.b16 %v92
  %v356 = vunpack.c.l.b16 %v93
  %v357 = vunpack.c.l.b16 %v94
  %v358 = vunpack.c.l.b16 %v95
  %v359 = vunpack.c.l.b16 %v96
  %v360 = vunpack.c.l.b16 %v97
  %v361 = vunpack.c.l.b16 %v98
  %v362 = vunpack.c.l.b16 %v99
  %v363 = vunpack.c.l.b16 %v100
  %v364 = vunpack.c.l.b16 %v101
  %v365 = vunpack.c.l.b16 %v102
  %v366 = vunpack.c.l.b16 %v103
  %v367 = vunpack.c.l.b16 %v104
  %v368 = vunpack.c.l.b16 %v105
  %v369 = vunpack.c.l.b16 %v106
  %v370 = vunpack.c.l.b16 %v107
  %v371 = vunpack.c.l.b16 %v108
  %v372 = vunpack.c.l.b16 %v109
  %v373 = vunpack.c.l.b16 %v110
  %v374 = vunpack.c.l.b16 %v111
  %v375 = vunpack.c.l.b16 %v112
  %v376 = vunpack.c.l.b16 %v113
  %v377 = vunpack.c.l.b16 %v114
  %v378 = vunpack.c.l.b16 %v115
  %v379 = vunpack.c.l.b16 %v116
  %v380 = vunpack.c.l.b16 %v117
  %v381 = vunpack.c.l.b16 %v118
  %v382 = vunpack.c.l.b16 %v119
  %v383 = vunpack.c.l.b16 %v120
  %v384 = vunpack.c.l.b16 %v121
  %v385 = vunpack.c.l.b16 %v122
  %v386 = vunpack.c.l.b16 %v123
  %v387 = vunpack.c.l.b16 %v124
  %v388 = vunpack.c.l.b16 %v125
  %v389 = vunpack.c.l.b16 %v126
  %v390 = vunpack.c.l.b16 %v127
  %v391 = vunpack.c.l.b16 %v128
  %v392 = vunpack.c.l.b16 %v129
  %v393 = vunpack.c.l.b16 %v130
  %v394 = vunpack.c.l.b16 %v131
  %v395 = vunpack.c.l.b16 %v132
  %v396 = vunpack.c.l.b16 %v133
  %v397 = vunpack.c.l.b16 %v134
  %v398 = vunpack.c.l.b16 %v135
  %v399 = vunpack.c.l.b16 %v136
  %v400 = vunpack.c.l.b16 %v137
  %v401 = vunpack.c.l.b16 %v138
  %v402 = vunpack.c.l.b16 %v139
  %v403 = vunpack.c.l.b16 %v140
  %v404 = vunpack.c.l.b16 %v141
  %v405 = vunpack.c.l.b16 %v142
  %v406 = vunpack.c.l.b16 %v143
  %v407 = vunpack.c.l.b16 %v144
  %v408 = vunpack.c.l.b16 %v145
  %v409 = vunpack.c.l.b16 %v146
  %v410 = vunpack.c.l.b16 %v147
  %v411 = vunpack.c.l.b16 %v148
  %v412 = vunpack.c.l.b16 %v149
  %v413 = vunpack.c.l.b16 %v150
  %v414 = vunpack.c.l.b16 %v151
  %v415 = vunpack.c.l.b16 %v152
  %v416 = vunpack.c.l.b16 %v153
  %v417 = vunpack.c.l.b16 %v154
  %v418 = vunpack.c.l.b16 %v155
  %v419 = vunpack.c.l.b16 %v156
  %v420 = vunpack.c.l.b16 %v157
  %v421 = vunpack.c.l.b16 %v158
  %v422 = vunpack.c.l.b16 %v159
  %v423 = vunpack.c.l.b16 %v160
  %v424 = vunpack.c.l.b16 %v161
  %v425 = vunpack.c.l.b16 %v162
  %v426 = vunpack.c.l.b16 %v163
  %v427 = vunpack.c.l.b16 %v164
  %v428 = vunpack.c.l.b16 %v165
  %v429 = vunpack.c.l.b16 %v166
  %v430 = vunpack.c.l.b16 %v167
  %v431 = vunpack.c.l.b16 %v168
  %v432 = vunpack.c.l.b16 %v169
  %v433 = vunpack.c.l.b16 %v170
  %v434 = vunpack.c.l.b16 %v171
  %v435 = vunpack.c.l.b16 %v172
  %v436 = vunpack.c.l.b16 %v173
  %v437 = vunpack.c.l.b16 %v174
  %v438 = vunpack.c.l.b16 %v175
  %v439 = vunpack.c.l.b16 %v176
  %v440 = vunpack.c.l.b16 %v177
  %v441 = vunpack.c.l.b16 %v178
  %v442 = vunpack.c.l.b16 %v179
  %v443 = vunpack.c.l.b16 %v180
  %v444 = vunpack.c.l.b16 %v181
  %v445 = vunpack.c.l.b16 %v182
  %v446 = vunpack.c.l.b16 %v183
  %v447 = vunpack.c.l.b16 %v184
  %v448 = vunpack.c.l.b16 %v185
  %v449 = vunpack.c.l.b16 %v186
  %v450 = vunpack.c.l.b16 %v187
  %v451 = vunpack.c.l.b16 %v188
  %v452 = vunpack.c.l.b16 %v189
  %v453 = vunpack.c.l.b16 %v190
  %v454 = vunpack.c.l.b16 %v191
  %v455 = vunpack.c.l.b16 %v192
  %v456 = vunpack.c.l.b16 %v193
  %v457 = vunpack.c.l.b16 %v194
  %v458 = vunpack.c.l.b16 %v195
  %v459 = vunpack.c.l.b16 %v196
  %v460 = vunpack.c.l.b16 %v197
  %v461 = vunpack.c.l.b16 %v198
  %v462 = vunpack.c.l.b16 %v199
  %v463 = vunpack.c.l.b16 %v200
  %v464 = vunpack.c.l.b16 %v201
  %v465 = vunpack.c.l.b16 %v202
  %v466 = vunpack.c.l.b16 %v203
  %v467 = vunpack.c.l.b16 %v204
  %v468 = vunpack.c.l.b16 %v205
  %v469 = vunpack.c.l.b16 %v206
  %v470 = vunpack.c.l.b16 %v207
  %v471 = vunpack.c.l.b16 %v208
  %v472 = vunpack.c.l.b16 %v209
  %v473 = vunpack.c.l.b16 %v210
  %v474 = vunpack.c.l.b16 %v211
  %v475 = vpack.c.b16 %v348, %v347
  %v476 = vpack.c.b16 %v350, %v349
  %v477 = vpack.c.b16 %v352, %v351
  %v478 = vpack.c.b16 %v354, %v353
  %v479 = vpack.c.b16 %v356, %v355
  %v480 = vpack.c.b16 %v358, %v357
  %v481 = vpack.c.b16 %v360, %v359
  %v482 = vpack.c.b16 %v362, %v361
  %v483 = vpack.c.b16 %v364, %v363
  %v484 = vpack.c.b16 %v366, %v365
  %v485 = vpack.c.b16 %v368, %v367
  %v486 = vpack.c.b16 %v370, %v369
  %v487 = vpack.c.b16 %v372, %v371
  %v488 = vpack.c.b16 %v374, %v373
  %v489 = vpack.c.b16 %v376, %v375
  %v490 = vpack.c.b16 %v378, %v377
  %v491 = vpack.c.b16 %v380, %v379
  %v492 = vpack.c.b16 %v382, %v381
  %v493 = vpack.c.b16 %v384, %v383
  %v494 = vpack.c.b16 %v386, %v385
  %v495 = vpack.c.b16 %v388, %v387
  %v496 = vpack.c.b16 %v390, %v389
  %v497 = vpack.c.b16 %v392, %v391
  %v498 = vpack.c.b16 %v394, %v393
  %v499 = vpack.c.b16 %v396, %v395
  %v500 = vpack.c.b16 %v398, %v397
  %v501 = vpack.c.b16 %v400, %v399
  %v502 = vpack.c.b16 %v402, %v401
  %v503 = vpack.c.b16 %v404, %v403
  %v504 = vpack.c.b16 %v406, %v405
  %v505 = vpack.c.b16 %v408, %v407
  %v506 = vpack.c.b16 %v410, %v409
  %v507 = vpack.c.b16 %v412, %v411
  %v508 = vpack.c.b16 %v414, %v413
  %v509 = vpack.c.b16 %v416, %v415
  %v510 = vpack.c.b16 %v418, %v417
  %v511 = vpack.c.b16 %v420, %v419
  %v512 = vpack.c.b16 %v422, %v421
  %v513 = vpack.c.b16 %v424, %v423
  %v514 = vpack.c.b16 %v426, %v425
  %v515 = vpack.c.b16 %v428, %v427
  %v516 = vpack.c.b16 %v430, %v429
  %v517 = vpack.c.b16 %v432, %v431
  %v518 = vpack.c.b16 %v434, %v433
  %v519 = vpack.c.b16 %v436, %v435
  %v520 = vpack.c.b16 %v438, %v437
  %v521 = vpack.c.b16 %v440, %v439
  %v522 = vpack.c.b16 %v442, %v441
  %v523 = vpack.c.b16 %v444, %v443
  %v524 = vpack.c.b16 %v446, %v445
  %v525 = vpack.c.b16 %v448, %v447
  %v526 = vpack.c.b16 %v450, %v449
  %v527 = vpack.c.b16 %v452, %v451
  %v528 = vpack.c.b16 %v454, %v453
  %v529 = vpack.c.b16 %v456, %v455
  %v530 = vpack.c.b16 %v458, %v457
  %v531 = vpack.c.b16 %v460, %v459
  %v532 = vpack.c.b16 %v462, %v461
  %v533 = vpack.c.b16 %v464, %v463
  %v534 = vpack.c.b16 %v466, %v465
  %v535 = vpack.c.b16 %v468, %v467
  %v536 = vpack.c.b16 %v470, %v469
  %v537 = vpack.c.b16 %v472, %v471
  %v538 = vpack.c.b16 %v474, %v473
  %603 = vmatprep.subr.bf16.mxu0 0
  %604 = vmatpush1.bf16.msra.mxu0 %v482
  %605 = vmatprep.subr.bf16.mxu0 0
  %606 = vmatpush1.bf16.msra.mxu0 %v481
  %607 = vmatprep.subr.bf16.mxu0 0
  %608 = vmatpush1.bf16.msra.mxu0 %v480
  %609 = vmatprep.subr.bf16.mxu0 0
  %610 = vmatpush1.bf16.msra.mxu0 %v479
  %611 = vmatprep.subr.bf16.mxu0 0
  %612 = vmatpush1.bf16.msra.mxu0 %v478
  %613 = vmatprep.subr.bf16.mxu0 0
  %614 = vmatpush1.bf16.msra.mxu0 %v477
  %615 = vmatprep.subr.bf16.mxu0 0
  %616 = vmatpush1.bf16.msra.mxu0 %v476
  %617 = vmatprep.subr.bf16.mxu0 0
  %618 = vmatpush1.bf16.msra.mxu0 %v475
  %619 = vmatprep.subr.bf16.mxu0 0
  %620 = vmatpush2.bf16.msra.mxu0 %v490
  %621 = vmatprep.subr.bf16.mxu0 0
  %622 = vmatpush2.bf16.msra.mxu0 %v489
  %623 = vmatprep.subr.bf16.mxu0 0
  %624 = vmatpush2.bf16.msra.mxu0 %v488
  %625 = vmatprep.subr.bf16.mxu0 0
  %626 = vmatpush2.bf16.msra.mxu0 %v487
  %627 = vmatprep.subr.bf16.mxu0 0
  %628 = vmatpush2.bf16.msra.mxu0 %v486
  %629 = vmatprep.subr.bf16.mxu0 0
  %630 = vmatpush2.bf16.msra.mxu0 %v485
  %631 = vmatprep.subr.bf16.mxu0 0
  %632 = vmatpush2.bf16.msra.mxu0 %v484
  %633 = vmatprep.subr.bf16.mxu0 0
  %634 = vmatpush2.bf16.msra.mxu0 %v483
  %635 = vmatprep.mubr.bf16.mxu0 %v77
  %636 = vmatmul.mubr.bf16.gmra.mxu0 %v76
  %v637 = vpop.f32.mrf.mxu0
  %v638 = vadd.f32 %v217, %v637
  %v639 = vpop.f32.mrf.mxu0
  %v640 = vpop.f32.mrf.mxu0
  %v641 = vpop.f32.mrf.mxu0
  %642 = vdwg.mxu0
  %643 = vmatprep.subr.bf16.mxu0 0
  %644 = vmatpush1.bf16.msra.mxu0 %v498
  %645 = vmatprep.subr.bf16.mxu0 0
  %646 = vmatpush1.bf16.msra.mxu0 %v497
  %647 = vmatprep.subr.bf16.mxu0 0
  %648 = vmatpush1.bf16.msra.mxu0 %v496
  %649 = vmatprep.subr.bf16.mxu0 0
  %650 = vmatpush1.bf16.msra.mxu0 %v495
  %651 = vmatprep.subr.bf16.mxu0 0
  %652 = vmatpush1.bf16.msra.mxu0 %v494
  %653 = vmatprep.subr.bf16.mxu0 0
  %654 = vmatpush1.bf16.msra.mxu0 %v493
  %655 = vmatprep.subr.bf16.mxu0 0
  %656 = vmatpush1.bf16.msra.mxu0 %v492
  %657 = vmatprep.subr.bf16.mxu0 0
  %658 = vmatpush1.bf16.msra.mxu0 %v491
  %659 = vmatprep.subr.bf16.mxu0 0
  %660 = vmatpush2.bf16.msra.mxu0 %v506
  %661 = vmatprep.subr.bf16.mxu0 0
  %662 = vmatpush2.bf16.msra.mxu0 %v505
  %663 = vmatprep.subr.bf16.mxu0 0
  %664 = vmatpush2.bf16.msra.mxu0 %v504
  %665 = vmatprep.subr.bf16.mxu0 0
  %666 = vmatpush2.bf16.msra.mxu0 %v503
  %667 = vmatprep.subr.bf16.mxu0 0
  %668 = vmatpush2.bf16.msra.mxu0 %v502
  %669 = vmatprep.subr.bf16.mxu0 0
  %670 = vmatpush2.bf16.msra.mxu0 %v501
  %671 = vmatprep.subr.bf16.mxu0 0
  %672 = vmatpush2.bf16.msra.mxu0 %v500
  %673 = vmatprep.subr.bf16.mxu0 0
  %674 = vmatpush2.bf16.msra.mxu0 %v499
  %675 = vmatprep.mubr.bf16.mxu0 %v79
  %676 = vmatmul.mubr.bf16.gmra.mxu0 %v78
  %v677 = vpop.f32.mrf.mxu0
  %v678 = vadd.f32 %v638, %v677
  %v679 = vpop.f32.mrf.mxu0
  %v680 = vpop.f32.mrf.mxu0
  %v681 = vpop.f32.mrf.mxu0
  %682 = vdwg.mxu0
  %683 = vmatprep.subr.bf16.mxu0 0
  %684 = vmatpush1.bf16.msra.mxu0 %v514
  %685 = vmatprep.subr.bf16.mxu0 0
  %686 = vmatpush1.bf16.msra.mxu0 %v513
  %687 = vmatprep.subr.bf16.mxu0 0
  %688 = vmatpush1.bf16.msra.mxu0 %v512
  %689 = vmatprep.subr.bf16.mxu0 0
  %690 = vmatpush1.bf16.msra.mxu0 %v511
  %691 = vmatprep.subr.bf16.mxu0 0
  %692 = vmatpush1.bf16.msra.mxu0 %v510
  %693 = vmatprep.subr.bf16.mxu0 0
  %694 = vmatpush1.bf16.msra.mxu0 %v509
  %695 = vmatprep.subr.bf16.mxu0 0
  %696 = vmatpush1.bf16.msra.mxu0 %v508
  %697 = vmatprep.subr.bf16.mxu0 0
  %698 = vmatpush1.bf16.msra.mxu0 %v507
  %699 = vmatprep.subr.bf16.mxu0 0
  %700 = vmatpush2.bf16.msra.mxu0 %v522
  %701 = vmatprep.subr.bf16.mxu0 0
  %702 = vmatpush2.bf16.msra.mxu0 %v521
  %703 = vmatprep.subr.bf16.mxu0 0
  %704 = vmatpush2.bf16.msra.mxu0 %v520
  %705 = vmatprep.subr.bf16.mxu0 0
  %706 = vmatpush2.bf16.msra.mxu0 %v519
  %707 = vmatprep.subr.bf16.mxu0 0
  %708 = vmatpush2.bf16.msra.mxu0 %v518
  %709 = vmatprep.subr.bf16.mxu0 0
  %710 = vmatpush2.bf16.msra.mxu0 %v517
  %711 = vmatprep.subr.bf16.mxu0 0
  %712 = vmatpush2.bf16.msra.mxu0 %v516
  %713 = vmatprep.subr.bf16.mxu0 0
  %714 = vmatpush2.bf16.msra.mxu0 %v515
  %715 = vmatprep.mubr.bf16.mxu0 %v81
  %716 = vmatmul.mubr.bf16.gmra.mxu0 %v80
  %v717 = vpop.f32.mrf.mxu0
  %v718 = vadd.f32 %v678, %v717
  %v719 = vpop.f32.mrf.mxu0
  %v720 = vpop.f32.mrf.mxu0
  %v721 = vpop.f32.mrf.mxu0
  %722 = vdwg.mxu0
  %723 = vmatprep.subr.bf16.mxu0 0
  %724 = vmatpush1.bf16.msra.mxu0 %v530
  %725 = vmatprep.subr.bf16.mxu0 0
  %726 = vmatpush1.bf16.msra.mxu0 %v529
  %727 = vmatprep.subr.bf16.mxu0 0
  %728 = vmatpush1.bf16.msra.mxu0 %v528
  %729 = vmatprep.subr.bf16.mxu0 0
  %730 = vmatpush1.bf16.msra.mxu0 %v527
  %731 = vmatprep.subr.bf16.mxu0 0
  %732 = vmatpush1.bf16.msra.mxu0 %v526
  %733 = vmatprep.subr.bf16.mxu0 0
  %734 = vmatpush1.bf16.msra.mxu0 %v525
  %735 = vmatprep.subr.bf16.mxu0 0
  %736 = vmatpush1.bf16.msra.mxu0 %v524
  %737 = vmatprep.subr.bf16.mxu0 0
  %738 = vmatpush1.bf16.msra.mxu0 %v523
  %739 = vmatprep.subr.bf16.mxu0 0
  %740 = vmatpush2.bf16.msra.mxu0 %v538
  %741 = vmatprep.subr.bf16.mxu0 0
  %742 = vmatpush2.bf16.msra.mxu0 %v537
  %743 = vmatprep.subr.bf16.mxu0 0
  %744 = vmatpush2.bf16.msra.mxu0 %v536
  %745 = vmatprep.subr.bf16.mxu0 0
  %746 = vmatpush2.bf16.msra.mxu0 %v535
  %747 = vmatprep.subr.bf16.mxu0 0
  %748 = vmatpush2.bf16.msra.mxu0 %v534
  %749 = vmatprep.subr.bf16.mxu0 0
  %750 = vmatpush2.bf16.msra.mxu0 %v533
  %751 = vmatprep.subr.bf16.mxu0 0
  %752 = vmatpush2.bf16.msra.mxu0 %v532
  %753 = vmatprep.subr.bf16.mxu0 0
  %754 = vmatpush2.bf16.msra.mxu0 %v531
  %755 = vmatprep.mubr.bf16.mxu0 %v83
  %756 = vmatmul.mubr.bf16.gmra.mxu0 %v82
  %v757 = vpop.f32.mrf.mxu0
  %v758 = vadd.f32 %v718, %v757
  %v759 = vpop.f32.mrf.mxu0
  %v760 = vpop.f32.mrf.mxu0
  %v761 = vpop.f32.mrf.mxu0
  %762 = vdwg.mxu0
  %v763 = vmax.f32 %v758, 0.0
  %v764 = vpack.c.bf16 %v763, %v763
  %v765 = vld [vmem:[%s3] sm:$0xf]
  %v766 = vld [vmem:[%s3 + $0x4] sm:$0xf]
  %v767 = vld [vmem:[%s3 + $0x8] sm:$0xf]
  %v768 = vld [vmem:[%s3 + $0xc] sm:$0xf]
  %v769 = vld [vmem:[%s3 + $0x10] sm:$0xf]
  %v770 = vld [vmem:[%s3 + $0x14] sm:$0xf]
  %v771 = vld [vmem:[%s3 + $0x18] sm:$0xf]
  %v772 = vld [vmem:[%s3 + $0x1c] sm:$0xf]
  %v773 = vld [vmem:[%s4] sm:$0x1]
  %v775 = vlaneseq
  %v776 = vshrl.u32 %v775, 7
  %v777 = vsub.s32 0, %v776
  %v778 = vrot.slane %v773, %v777
  %v788 = vunpack.c.l.b16 %v765
  %v789 = vunpack.c.l.b16 %v766
  %v790 = vunpack.c.l.b16 %v767
  %v791 = vunpack.c.l.b16 %v768
  %v792 = vunpack.c.l.b16 %v769
  %v793 = vunpack.c.l.b16 %v770
  %v794 = vunpack.c.l.b16 %v771
  %v795 = vunpack.c.l.b16 %v772
  %v796 = vpack.c.b16 %v789, %v788
  %v797 = vpack.c.b16 %v791, %v790
  %v798 = vpack.c.b16 %v793, %v792
  %v799 = vpack.c.b16 %v795, %v794
  %vm804 = vcmask 523264
  %v806 = vsel %vm804, %v764, 0
  %808 = vmatprep.subr.bf16.mxu0 0
  %809 = vmatpush1.bf16.msra.mxu0 0
  %810 = vmatprep.subr.bf16.mxu0 0
  %811 = vmatpush1.bf16.msra.mxu0 0
  %812 = vmatprep.subr.bf16.mxu0 0
  %813 = vmatpush1.bf16.msra.mxu0 0
  %814 = vmatprep.subr.bf16.mxu0 0
  %815 = vmatpush1.bf16.msra.mxu0 0
  %816 = vmatprep.subr.bf16.mxu0 0
  %817 = vmatpush1.bf16.msra.mxu0 %v799
  %818 = vmatprep.subr.bf16.mxu0 0
  %819 = vmatpush1.bf16.msra.mxu0 %v798
  %820 = vmatprep.subr.bf16.mxu0 0
  %821 = vmatpush1.bf16.msra.mxu0 %v797
  %822 = vmatprep.subr.bf16.mxu0 0
  %823 = vmatpush1.bf16.msra.mxu0 %v796
  %824 = vmatprep.subr.bf16.mxu0 0
  %825 = vmatpush2.bf16.msra.mxu0 0
  %826 = vmatprep.subr.bf16.mxu0 0
  %827 = vmatpush2.bf16.msra.mxu0 0
  %828 = vmatprep.subr.bf16.mxu0 0
  %829 = vmatpush2.bf16.msra.mxu0 0
  %830 = vmatprep.subr.bf16.mxu0 0
  %831 = vmatpush2.bf16.msra.mxu0 0
  %832 = vmatprep.subr.bf16.mxu0 0
  %833 = vmatpush2.bf16.msra.mxu0 0
  %834 = vmatprep.subr.bf16.mxu0 0
  %835 = vmatpush2.bf16.msra.mxu0 0
  %836 = vmatprep.subr.bf16.mxu0 0
  %837 = vmatpush2.bf16.msra.mxu0 0
  %838 = vmatprep.subr.bf16.mxu0 0
  %839 = vmatpush2.bf16.msra.mxu0 0
  %840 = vmatprep.mubr.bf16.mxu0 0
  %841 = vmatmul.mubr.bf16.gmra.mxu0 %v806
  %v842 = vpop.f32.mrf.mxu0
  %v843 = vadd.f32 %v778, %v842
  %v844 = vpop.f32.mrf.mxu0
  %v845 = vpop.f32.mrf.mxu0
  %v846 = vpop.f32.mrf.mxu0
  %847 = vdwg.mxu0
  %v848 = vmax.f32 %v843, 0.0
  %v849 = vpack.c.bf16 %v848, %v848
  %v850 = vld [vmem:[%s5] sm:$0xff]
  %v851 = vld [vmem:[%s5 + $0x8] sm:$0xff]
  %v852 = vld [vmem:[%s5 + $0x10] sm:$0xff]
  %v853 = vld [vmem:[%s5 + $0x18] sm:$0xff]
  %v854 = vld [vmem:[%s6] sm:$0x3]
  %v856 = vlaneseq
  %v857 = vshrl.u32 %v856, 7
  %v858 = vsub.s32 0, %v857
  %v859 = vrot.slane %v854, %v858
  %v860 = vlaneseq
  %v861 = vshrl.u32 %v860, 7
  %v862 = vsub.s32 1, %v861
  %v863 = vrot.slane %v854, %v862
  %v870 = vunpack.c.l.b16 %v850
  %v871 = vunpack.c.h.b16 %v850
  %v872 = vunpack.c.l.b16 %v851
  %v873 = vunpack.c.h.b16 %v851
  %v874 = vunpack.c.l.b16 %v852
  %v875 = vunpack.c.h.b16 %v852
  %v876 = vunpack.c.l.b16 %v853
  %v877 = vunpack.c.h.b16 %v853
  %v878 = vpack.c.b16 %v872, %v870
  %v879 = vpack.c.b16 %v873, %v871
  %v880 = vpack.c.b16 %v876, %v874
  %v881 = vpack.c.b16 %v877, %v875
  %vm886 = vcmask 261120
  %v888 = vsel %vm886, %v849, 0
  %890 = vmatprep.subr.bf16.mxu0 0
  %891 = vmatpush1.bf16.msra.mxu0 0
  %892 = vmatprep.subr.bf16.mxu0 0
  %893 = vmatpush1.bf16.msra.mxu0 0
  %894 = vmatprep.subr.bf16.mxu0 0
  %895 = vmatpush1.bf16.msra.mxu0 0
  %896 = vmatprep.subr.bf16.mxu0 0
  %897 = vmatpush1.bf16.msra.mxu0 0
  %898 = vmatprep.subr.bf16.mxu0 0
  %899 = vmatpush1.bf16.msra.mxu0 0
  %900 = vmatprep.subr.bf16.mxu0 0
  %901 = vmatpush1.bf16.msra.mxu0 0
  %902 = vmatprep.subr.bf16.mxu0 %v881
  %903 = vmatpush1.bf16.msra.mxu0 %v880
  %904 = vmatprep.subr.bf16.mxu0 %v879
  %905 = vmatpush1.bf16.msra.mxu0 %v878
  %906 = vmatprep.subr.bf16.mxu0 0
  %907 = vmatpush2.bf16.msra.mxu0 0
  %908 = vmatprep.subr.bf16.mxu0 0
  %909 = vmatpush2.bf16.msra.mxu0 0
  %910 = vmatprep.subr.bf16.mxu0 0
  %911 = vmatpush2.bf16.msra.mxu0 0
  %912 = vmatprep.subr.bf16.mxu0 0
  %913 = vmatpush2.bf16.msra.mxu0 0
  %914 = vmatprep.subr.bf16.mxu0 0
  %915 = vmatpush2.bf16.msra.mxu0 0
  %916 = vmatprep.subr.bf16.mxu0 0
  %917 = vmatpush2.bf16.msra.mxu0 0
  %918 = vmatprep.subr.bf16.mxu0 0
  %919 = vmatpush2.bf16.msra.mxu0 0
  %920 = vmatprep.subr.bf16.mxu0 0
  %921 = vmatpush2.bf16.msra.mxu0 0
  %922 = vmatprep.mubr.bf16.mxu0 0
  %923 = vmatmul.mubr.bf16.gmra.mxu0 %v888
  %v924 = vpop.f32.mrf.mxu0
  %v925 = vadd.f32 %v859, %v924
  %v926 = vpop.f32.mrf.mxu0
  %v927 = vadd.f32 %v863, %v926
  %v928 = vpop.f32.mrf.mxu0
  %v929 = vpop.f32.mrf.mxu0
  %930 = vdwg.mxu0
  %v931 = vmul.f32 %v927, 0.5
  %v932 = vmul.f32 %v931, 1.442695
  %v933 = vpow.pop %v932
  %v934 = vld [vmem:[%s7] sm:$0x3]
  %v935 = vmul.f32 %v933, %v934
  %v936 = vadd.f32 %v925, %v935
  %937 = vst [vmem:[%s8] sm:$0x3] %v936
  // Predicated region
  $region34: #{localization_forward.1} parent=0 // pred_check
    _
  $region35: #{localization_forward.1} parent=0 // pred_check_branch
    %939 = sbr.rel (0) target = $region37
  $region36: #{localization_forward.1} parent=0 // pred_region
    _
  $region37: #{localization_forward.1} parent=0 // pred_fallthru
    _
  // Predicated region
  $region38: #{localization_forward.1} parent=0 // pred_check
    _
  $region39: #{localization_forward.1} parent=0 // pred_check_branch
    %941 = sbr.rel (0) target = $region41
  $region40: #{localization_forward.1} parent=0 // pred_region
    _
  $region41: #{localization_forward.1} parent=0 // pred_fallthru
    _

</llo_original>
